<compile_context>
chip_gen: v6e
topology: v6e:2x2x1
jax: 0.10.0
libtpu: 0.0.40
codegen_flags: <defaults>
</compile_context>

<pallas_src>
import jax
import jax.numpy as jnp
from jax.experimental import pallas as pl
from jax.experimental.pallas import tpu as pltpu


def mlp_net_jo_kernel(xt_ref, w1t_ref, b1_ref, w2t_ref, b2_ref, wtt_ref, bt_ref,
                      out_ref):
    """One batch block in feature-major layout: refs are (features, batch_block)."""
    # Hidden layer 1: (h1, in) @ (in, Bblk) -> (h1, Bblk); bias add + ReLU in f32.
    h = jnp.dot(w1t_ref[...], xt_ref[...], preferred_element_type=jnp.float32)
    h = jnp.maximum(h + b1_ref[...], 0.0)

    # Hidden layer 2: (h2, h1) @ (h1, Bblk) -> (h2, Bblk).
    h = jnp.dot(w2t_ref[...], h.astype(w2t_ref.dtype),
                preferred_element_type=jnp.float32)
    h = jnp.maximum(h + b2_ref[...], 0.0)

    # Fused tails: one (out_pad, h2) @ (h2, Bblk) matmul + one lane-dense store
    # covering all tail outputs (no output activation).
    out = jnp.dot(wtt_ref[...], h.astype(wtt_ref.dtype),
                  preferred_element_type=jnp.float32)
    out_ref[...] = (out + bt_ref[...]).astype(out_ref.dtype)


def mlp_net_jo_forward(x, params, *, batch_block=None, compute_dtype=jnp.bfloat16):
    """x: (B, in_dim) f32.  params: w1,b1,w2,b2 (weights (in,out), biases (1,out)),
    tw0,tb0,tw1,tb1 for the two tails.  Returns [out0, out1] like the module."""
    B, in_dim = x.shape
    h1 = params["w1"].shape[1]
    h2 = params["w2"].shape[1]
    out_d0 = params["tw0"].shape[1]
    out_d1 = params["tw1"].shape[1]
    out_total = out_d0 + out_d1
    out_pad = int(pl.cdiv(out_total, 8) * 8)          # sublane-align fused tail rows

    if batch_block is None:
        batch_block = 128 if B <= 256 else (256 if B <= 2048 else 512)
    b_pad = int(pl.cdiv(B, batch_block) * batch_block)
    grid = (b_pad // batch_block,)

    # ---- feature-major operands (batch on the 128-lane axis) ----
    xt = jnp.pad(x.T, ((0, 0), (0, b_pad - B))).astype(compute_dtype)       # (in_dim, b_pad)
    w1t = params["w1"].T.astype(compute_dtype)                              # (h1, in_dim)
    b1 = params["b1"].T.astype(jnp.float32)                                 # (h1, 1)
    w2t = params["w2"].T.astype(compute_dtype)                              # (h2, h1)
    b2 = params["b2"].T.astype(jnp.float32)                                 # (h2, 1)
    # Fused + padded tail weights/bias: rows [0:out_d0] = tail0, [out_d0:out_total] = tail1.
    wtt = jnp.concatenate([params["tw0"], params["tw1"]], axis=1).T         # (out_total, h2)
    wtt = jnp.pad(wtt, ((0, out_pad - out_total), (0, 0))).astype(compute_dtype)
    bt = jnp.concatenate([params["tb0"], params["tb1"]], axis=1)            # (1, out_total)
    bt = jnp.pad(bt, ((0, 0), (0, out_pad - out_total))).T.astype(jnp.float32)  # (out_pad, 1)

    flops = 2 * b_pad * (in_dim * h1 + h1 * h2 + h2 * out_pad)
    bytes_accessed = int(
        xt.size * xt.dtype.itemsize
        + (w1t.size * w1t.dtype.itemsize + w2t.size * w2t.dtype.itemsize
           + wtt.size * wtt.dtype.itemsize)
        + (b1.size + b2.size + bt.size) * 4
        + out_pad * b_pad * 4
    )

    resident = lambda i: (0, 0)   # weights/biases: same block every step -> VMEM-resident
    tiled = lambda i: (0, i)      # x / out: tiled along the batch (lane) axis

    out_t = pl.pallas_call(
        mlp_net_jo_kernel,
        out_shape=jax.ShapeDtypeStruct((out_pad, b_pad), jnp.float32),
        grid=grid,
        in_specs=[
            pl.BlockSpec((in_dim, batch_block), tiled),
            pl.BlockSpec((h1, in_dim), resident),
            pl.BlockSpec((h1, 1), resident),
            pl.BlockSpec((h2, h1), resident),
            pl.BlockSpec((h2, 1), resident),
            pl.BlockSpec((out_pad, h2), resident),
            pl.BlockSpec((out_pad, 1), resident),
        ],
        out_specs=pl.BlockSpec((out_pad, batch_block), tiled),
        compiler_params=pltpu.CompilerParams(
            dimension_semantics=("parallel",),   # megacore split on v7x; no-op v5e/v6e
        ),
        cost_estimate=pl.CostEstimate(
            flops=flops, transcendentals=0, bytes_accessed=bytes_accessed),
    )(xt, w1t, b1, w2t, b2, wtt, bt)

    # Back to (B, out_total) batch-major, drop padding, split into the tail list.
    out = out_t[:out_total, :B].T
    return [out[:, :out_d0], out[:, out_d0:out_total]]


def init_params(key, in_dim, hid_layers, out_dims):
    """Deterministic synthetic init (uniform, PyTorch-like fan_in scaling)."""
    dims = [in_dim] + list(hid_layers)
    keys = jax.random.split(key, 2 * (len(hid_layers) + len(out_dims)))
    params = {}
    ki = 0

    def linear(kw, kb, fan_in, fan_out):
        bound = 1.0 / jnp.sqrt(fan_in)
        w = jax.random.uniform(kw, (fan_in, fan_out), jnp.float32, -bound, bound)
        b = jax.random.uniform(kb, (1, fan_out), jnp.float32, -bound, bound)
        return w, b

    for li in range(len(hid_layers)):
        w, b = linear(keys[ki], keys[ki + 1], dims[li], dims[li + 1])
        ki += 2
        params[f"w{li + 1}"] = w
        params[f"b{li + 1}"] = b

    for ti, od in enumerate(out_dims):
        w, b = linear(keys[ki], keys[ki + 1], dims[-1], od)
        ki += 2
        params[f"tw{ti}"] = w
        params[f"tb{ti}"] = b

    return params


def reference_forward(x, params):
    """Pure-JAX f32 reference with PyTorch MLPNetJo semantics."""
    h = jnp.maximum(x @ params["w1"] + params["b1"], 0.0)
    h = jnp.maximum(h @ params["w2"] + params["b2"], 0.0)
    return [
        h @ params["tw0"] + params["tb0"],
        h @ params["tw1"] + params["tb1"],
    ]


if __name__ == "__main__":
    # Small shapes consistent with the module: MLP on flat features, two tails.
    B = 8
    in_dim = 16
    hid_layers = [64, 32]
    out_dims = [8, 4]   # out_layer_activation=None for each tail

    key = jax.random.PRNGKey(0)
    k_x, k_p = jax.random.split(key)
    x = jax.random.normal(k_x, (B, in_dim), jnp.float32)
    params = init_params(k_p, in_dim, hid_layers, out_dims)

    refs = reference_forward(x, params)

    # 1) Exact-semantics check: f32 end-to-end inside the kernel.
    outs_f32 = [jax.block_until_ready(o)
                for o in mlp_net_jo_forward(x, params, compute_dtype=jnp.float32)]
    for o, r in zip(outs_f32, refs):
        assert o.shape == r.shape
        assert jnp.max(jnp.abs(o - r)) < 1e-4, "f32 kernel mismatch vs reference"

    # 2) Perf dtype (review): bf16 weights / matmul activations, f32 accumulate + bias + ReLU.
    outs_bf16 = [jax.block_until_ready(o)
                 for o in mlp_net_jo_forward(x, params, compute_dtype=jnp.bfloat16)]
    for o, r in zip(outs_bf16, refs):
        assert o.shape == r.shape
        assert jnp.max(jnp.abs(o - r)) < 5e-2, "bf16 kernel mismatch vs reference"

    print("KERNEL_OK")
</pallas_src>

<mosaic_0001>
module attributes {stable_mosaic.version = 11 : i64} {
  func.func @mlp_net_jo_kernel(%arg0: i32, %arg1: memref<16x128xf32, #tpu.memory_space<vmem>>, %arg2: memref<64x16xf32, #tpu.memory_space<vmem>>, %arg3: memref<64x1xf32, #tpu.memory_space<vmem>>, %arg4: memref<32x64xf32, #tpu.memory_space<vmem>>, %arg5: memref<32x1xf32, #tpu.memory_space<vmem>>, %arg6: memref<16x32xf32, #tpu.memory_space<vmem>>, %arg7: memref<16x1xf32, #tpu.memory_space<vmem>>, %arg8: memref<16x128xf32, #tpu.memory_space<vmem>>) attributes {dimension_semantics = [#tpu.dimension_semantics<parallel>], iteration_bounds = array<i64: 1>, scalar_prefetch = 0 : i64, scratch_operands = 0 : i64, tpu.core_type = #tpu.core_type<tc>, window_params = [{transform_indices = @transform_0, window_bounds = array<i64: 16, 128>}, {pipeline_mode = #tpu.pipeline_mode<synchronous>, transform_indices = @transform_1, window_bounds = array<i64: 64, 16>}, {pipeline_mode = #tpu.pipeline_mode<synchronous>, transform_indices = @transform_2, window_bounds = array<i64: 64, 1>}, {pipeline_mode = #tpu.pipeline_mode<synchronous>, transform_indices = @transform_3, window_bounds = array<i64: 32, 64>}, {pipeline_mode = #tpu.pipeline_mode<synchronous>, transform_indices = @transform_4, window_bounds = array<i64: 32, 1>}, {pipeline_mode = #tpu.pipeline_mode<synchronous>, transform_indices = @transform_5, window_bounds = array<i64: 16, 32>}, {pipeline_mode = #tpu.pipeline_mode<synchronous>, transform_indices = @transform_6, window_bounds = array<i64: 16, 1>}, {transform_indices = @transform_7, window_bounds = array<i64: 16, 128>}]} {
    %c0 = arith.constant 0 : index
    %c0_0 = arith.constant 0 : index
    %0 = vector.load %arg2[%c0, %c0_0] : memref<64x16xf32, #tpu.memory_space<vmem>>, vector<64x16xf32>
    %c0_1 = arith.constant 0 : index
    %c0_2 = arith.constant 0 : index
    %1 = vector.load %arg1[%c0_1, %c0_2] : memref<16x128xf32, #tpu.memory_space<vmem>>, vector<16x128xf32>
    %cst = arith.constant dense<0.000000e+00> : vector<64x128xf32>
    %2 = tpu.matmul %0, %1, %cst {dimension_numbers = #tpu.dot_dimension_numbers<[1], [0], [0], [1], [0, 0, 1, 1], [], []>} : vector<64x16xf32>, vector<16x128xf32>, vector<64x128xf32> -> vector<64x128xf32>
    %c0_3 = arith.constant 0 : index
    %c0_4 = arith.constant 0 : index
    %3 = vector.load %arg3[%c0_3, %c0_4] : memref<64x1xf32, #tpu.memory_space<vmem>>, vector<64x1xf32>
    %4 = vector.broadcast %3 : vector<64x1xf32> to vector<64x128xf32>
    %5 = arith.addf %2, %4 : vector<64x128xf32>
    %cst_5 = arith.constant 0.000000e+00 : f32
    %6 = vector.broadcast %cst_5 : f32 to vector<64x128xf32>
    %7 = arith.maximumf %5, %6 : vector<64x128xf32>
    %c0_6 = arith.constant 0 : index
    %c0_7 = arith.constant 0 : index
    %8 = vector.load %arg4[%c0_6, %c0_7] : memref<32x64xf32, #tpu.memory_space<vmem>>, vector<32x64xf32>
    %cst_8 = arith.constant dense<0.000000e+00> : vector<32x128xf32>
    %9 = tpu.matmul %8, %7, %cst_8 {dimension_numbers = #tpu.dot_dimension_numbers<[1], [0], [0], [1], [0, 0, 1, 1], [], []>} : vector<32x64xf32>, vector<64x128xf32>, vector<32x128xf32> -> vector<32x128xf32>
    %c0_9 = arith.constant 0 : index
    %c0_10 = arith.constant 0 : index
    %10 = vector.load %arg5[%c0_9, %c0_10] : memref<32x1xf32, #tpu.memory_space<vmem>>, vector<32x1xf32>
    %11 = vector.broadcast %10 : vector<32x1xf32> to vector<32x128xf32>
    %12 = arith.addf %9, %11 : vector<32x128xf32>
    %cst_11 = arith.constant 0.000000e+00 : f32
    %13 = vector.broadcast %cst_11 : f32 to vector<32x128xf32>
    %14 = arith.maximumf %12, %13 : vector<32x128xf32>
    %c0_12 = arith.constant 0 : index
    %c0_13 = arith.constant 0 : index
    %15 = vector.load %arg6[%c0_12, %c0_13] : memref<16x32xf32, #tpu.memory_space<vmem>>, vector<16x32xf32>
    %cst_14 = arith.constant dense<0.000000e+00> : vector<16x128xf32>
    %16 = tpu.matmul %15, %14, %cst_14 {dimension_numbers = #tpu.dot_dimension_numbers<[1], [0], [0], [1], [0, 0, 1, 1], [], []>} : vector<16x32xf32>, vector<32x128xf32>, vector<16x128xf32> -> vector<16x128xf32>
    %c0_15 = arith.constant 0 : index
    %c0_16 = arith.constant 0 : index
    %17 = vector.load %arg7[%c0_15, %c0_16] : memref<16x1xf32, #tpu.memory_space<vmem>>, vector<16x1xf32>
    %18 = vector.broadcast %17 : vector<16x1xf32> to vector<16x128xf32>
    %19 = arith.addf %16, %18 : vector<16x128xf32>
    %c0_17 = arith.constant 0 : index
    %c0_18 = arith.constant 0 : index
    %20 = vector.load %arg8[%c0_17, %c0_18] : memref<16x128xf32, #tpu.memory_space<vmem>>, vector<16x128xf32>
    tpu.vector_store %arg8[%c0_17, %c0_18], %19 {strides = array<i32>} : memref<16x128xf32, #tpu.memory_space<vmem>>, vector<16x128xf32>,
    return
  }
  func.func @transform_0(%arg0: i32) -> (i32, i32) {
    %c0_i32 = arith.constant 0 : i32
    %c0_i32_0 = arith.constant 0 : i32
    return %c0_i32, %arg0 : i32, i32
  }
  func.func @transform_1(%arg0: i32) -> (i32, i32) {
    %c0_i32 = arith.constant 0 : i32
    %c0_i32_0 = arith.constant 0 : i32
    %c0_i32_1 = arith.constant 0 : i32
    return %c0_i32, %c0_i32_0 : i32, i32
  }
  func.func @transform_2(%arg0: i32) -> (i32, i32) {
    %c0_i32 = arith.constant 0 : i32
    %c0_i32_0 = arith.constant 0 : i32
    %c0_i32_1 = arith.constant 0 : i32
    return %c0_i32, %c0_i32_0 : i32, i32
  }
  func.func @transform_3(%arg0: i32) -> (i32, i32) {
    %c0_i32 = arith.constant 0 : i32
    %c0_i32_0 = arith.constant 0 : i32
    %c0_i32_1 = arith.constant 0 : i32
    return %c0_i32, %c0_i32_0 : i32, i32
  }
  func.func @transform_4(%arg0: i32) -> (i32, i32) {
    %c0_i32 = arith.constant 0 : i32
    %c0_i32_0 = arith.constant 0 : i32
    %c0_i32_1 = arith.constant 0 : i32
    return %c0_i32, %c0_i32_0 : i32, i32
  }
  func.func @transform_5(%arg0: i32) -> (i32, i32) {
    %c0_i32 = arith.constant 0 : i32
    %c0_i32_0 = arith.constant 0 : i32
    %c0_i32_1 = arith.constant 0 : i32
    return %c0_i32, %c0_i32_0 : i32, i32
  }
  func.func @transform_6(%arg0: i32) -> (i32, i32) {
    %c0_i32 = arith.constant 0 : i32
    %c0_i32_0 = arith.constant 0 : i32
    %c0_i32_1 = arith.constant 0 : i32
    return %c0_i32, %c0_i32_0 : i32, i32
  }
  func.func @transform_7(%arg0: i32) -> (i32, i32) {
    %c0_i32 = arith.constant 0 : i32
    %c0_i32_0 = arith.constant 0 : i32
    return %c0_i32, %arg0 : i32, i32
  }
}

</mosaic_0001>

<llo_original>
// kernel: tpu_custom_call.1
$region0: #{tpu_custom_call.1}
  #allocation0 [shape = 'u32[]', space=smem, size = 0x4, offset = 0x4, fixed_abs, tag = 'smem constant byte address 0x4 - core index']
  #allocation1 [shape = 'u32[144,128]{1,0:T(1,128)}', space=vmem, size = 0x12000, scoped, tag = 'internal scratch']
  %s0 = inlined_call_operand.vmem [shape: f32[16,128], index: 0, kind: input, shape index: {}]
  %s1 = inlined_call_operand.vmem [shape: f32[64,16], index: 1, kind: input, shape index: {}]
  %s2 = inlined_call_operand.vmem [shape: f32[64,1], index: 2, kind: input, shape index: {}]
  %s3 = inlined_call_operand.vmem [shape: f32[32,64], index: 3, kind: input, shape index: {}]
  %s4 = inlined_call_operand.vmem [shape: f32[32,1], index: 4, kind: input, shape index: {}]
  %s5 = inlined_call_operand.vmem [shape: f32[16,32], index: 5, kind: input, shape index: {}]
  %s6 = inlined_call_operand.vmem [shape: f32[16,1], index: 6, kind: input, shape index: {}]
  %s7 = inlined_call_operand.hbm [shape: f32[16,128], index: 7, kind: output, shape index: {}]
  %s8 = sld [smem:[#allocation0]]
  $region38: #{tpu_custom_call.1} parent=0
    _
  %s10 = ssub.s32 1, %s8
  %s11 = scalar_select 0, %s10, %s8
  $region1: #{tpu_custom_call.1} parent=0
    #allocation2 [shape = 'u8[8192]{0}', space=vmem, size = 0x2000, scoped, tag = 'output window, operand 0, single buffered']
    #allocation3 [shape = 's32[1]{0}', space=sflag, size = 0x4, scoped, tag = 'scoped memory for tpu_custom_call.1']
    %12 = vsyncpa [#allocation3], 0
    // Predicated region
    $region2: #{tpu_custom_call.1} parent=1 // pred_check
      _
    $region3: #{tpu_custom_call.1} parent=1 // pred_check_branch
      %14 = sbr.rel (0) target = $region5
    $region4: #{tpu_custom_call.1} parent=1 // pred_region
      _
    $region5: #{tpu_custom_call.1} parent=1 // pred_fallthru
      _
    // Predicated region
    $region6: #{tpu_custom_call.1} parent=1 // pred_check
      _
    $region7: #{tpu_custom_call.1} parent=1 // pred_check_branch
      %16 = sbr.rel (0) target = $region9
    $region8: #{tpu_custom_call.1} parent=1 // pred_region
      _
    $region9: #{tpu_custom_call.1} parent=1 // pred_fallthru
      _
    // Predicated region
    $region10: #{tpu_custom_call.1} parent=1 // pred_check
      _
    $region11: #{tpu_custom_call.1} parent=1 // pred_check_branch
      %18 = sbr.rel (0) target = $region13
    $region12: #{tpu_custom_call.1} parent=1 // pred_region
      _
    $region13: #{tpu_custom_call.1} parent=1 // pred_fallthru
      _
    // Predicated region
    $region14: #{tpu_custom_call.1} parent=1 // pred_check
      _
    $region15: #{tpu_custom_call.1} parent=1 // pred_check_branch
      %20 = sbr.rel (0) target = $region17
    $region16: #{tpu_custom_call.1} parent=1 // pred_region
      _
    $region17: #{tpu_custom_call.1} parent=1 // pred_fallthru
      _
    // Predicated region
    $region18: #{tpu_custom_call.1} parent=1 // pred_check
      _
    $region19: #{tpu_custom_call.1} parent=1 // pred_check_branch
      %22 = sbr.rel (0) target = $region21
    $region20: #{tpu_custom_call.1} parent=1 // pred_region
      _
    $region21: #{tpu_custom_call.1} parent=1 // pred_fallthru
      _
    // Predicated region
    $region22: #{tpu_custom_call.1} parent=1 // pred_check
      _
    $region23: #{tpu_custom_call.1} parent=1 // pred_check_branch
      %24 = sbr.rel (0) target = $region25
    $region24: #{tpu_custom_call.1} parent=1 // pred_region
      _
    $region25: #{tpu_custom_call.1} parent=1 // pred_fallthru
      _
    // Predicated region
    $region26: #{tpu_custom_call.1} parent=1 // pred_check
      _
    $region27: #{tpu_custom_call.1} parent=1 // pred_check_branch
      %26 = sbr.rel (0) target = $region29
    $region28: #{tpu_custom_call.1} parent=1 // pred_region
      _
    $region29: #{tpu_custom_call.1} parent=1 // pred_fallthru
      _
    %v27 = vld [vmem:[%s1] sm:$0xff]
    %v28 = vld [vmem:[%s1 + $0x8] sm:$0xff]
    %v29 = vld [vmem:[%s1 + $0x10] sm:$0xff]
    %v30 = vld [vmem:[%s1 + $0x18] sm:$0xff]
    %v31 = vld [vmem:[%s1 + $0x20] sm:$0xff]
    %v32 = vld [vmem:[%s1 + $0x28] sm:$0xff]
    %v33 = vld [vmem:[%s1 + $0x30] sm:$0xff]
    %v34 = vld [vmem:[%s1 + $0x38] sm:$0xff]
    %v35 = vld [vmem:[%s0] sm:$0xff]
    %v36 = vld [vmem:[%s0 + $0x8] sm:$0xff]
    %v37 = vld [vmem:[%s2] sm:$0xff]
    %v38 = vld [vmem:[%s2 + $0x8] sm:$0xff]
    %v39 = vld [vmem:[%s2 + $0x10] sm:$0xff]
    %v40 = vld [vmem:[%s2 + $0x18] sm:$0xff]
    %v41 = vld [vmem:[%s2 + $0x20] sm:$0xff]
    %v42 = vld [vmem:[%s2 + $0x28] sm:$0xff]
    %v43 = vld [vmem:[%s2 + $0x30] sm:$0xff]
    %v44 = vld [vmem:[%s2 + $0x38] sm:$0xff]
    %46 = vset.pattern.permute.xlu0 0
    %47 = vperm.xlu0 %46, %v37
    %v48 = vpop.permute.xlu0 %47
    %51 = vset.pattern.permute.xlu0 0
    %52 = vperm.xlu0 %51, %v38
    %v53 = vpop.permute.xlu0 %52
    %56 = vset.pattern.permute.xlu0 0
    %57 = vperm.xlu0 %56, %v39
    %v58 = vpop.permute.xlu0 %57
    %61 = vset.pattern.permute.xlu0 0
    %62 = vperm.xlu0 %61, %v40
    %v63 = vpop.permute.xlu0 %62
    %66 = vset.pattern.permute.xlu0 0
    %67 = vperm.xlu0 %66, %v41
    %v68 = vpop.permute.xlu0 %67
    %71 = vset.pattern.permute.xlu0 0
    %72 = vperm.xlu0 %71, %v42
    %v73 = vpop.permute.xlu0 %72
    %76 = vset.pattern.permute.xlu0 0
    %77 = vperm.xlu0 %76, %v43
    %v78 = vpop.permute.xlu0 %77
    %81 = vset.pattern.permute.xlu0 0
    %82 = vperm.xlu0 %81, %v44
    %v83 = vpop.permute.xlu0 %82
    %vm85 = vcmask 130048
    %v87 = vsel %vm85, %v27, 0
    %v90 = vsel %vm85, %v28, 0
    %v93 = vsel %vm85, %v29, 0
    %v96 = vsel %vm85, %v30, 0
    %v99 = vsel %vm85, %v31, 0
    %v102 = vsel %vm85, %v32, 0
    %v105 = vsel %vm85, %v33, 0
    %v108 = vsel %vm85, %v34, 0
    %110 = vmatprep.subr.mxu0 0.0
    %111 = vmatpush1.msra.mxu0 0.0
    %112 = vmatprep.subr.mxu0 0.0
    %113 = vmatpush1.msra.mxu0 0.0
    %114 = vmatprep.subr.mxu0 0.0
    %115 = vmatpush1.msra.mxu0 0.0
    %116 = vmatprep.subr.mxu0 0.0
    %117 = vmatpush1.msra.mxu0 0.0
    %118 = vmatprep.subr.mxu0 0.0
    %119 = vmatpush1.msra.mxu0 0.0
    %120 = vmatprep.subr.mxu0 0.0
    %121 = vmatpush1.msra.mxu0 0.0
    %122 = vmatprep.subr.mxu0 0.0
    %123 = vmatpush1.msra.mxu0 0.0
    %124 = vmatprep.subr.mxu0 0.0
    %125 = vmatpush1.msra.mxu0 0.0
    %126 = vmatprep.subr.mxu0 0.0
    %127 = vmatpush1.msra.mxu0 0.0
    %128 = vmatprep.subr.mxu0 0.0
    %129 = vmatpush1.msra.mxu0 0.0
    %130 = vmatprep.subr.mxu0 0.0
    %131 = vmatpush1.msra.mxu0 0.0
    %132 = vmatprep.subr.mxu0 0.0
    %133 = vmatpush1.msra.mxu0 0.0
    %134 = vmatprep.subr.mxu0 0.0
    %135 = vmatpush1.msra.mxu0 0.0
    %136 = vmatprep.subr.mxu0 0.0
    %137 = vmatpush1.msra.mxu0 0.0
    %138 = vmatprep.subr.mxu0 0.0
    %139 = vmatpush1.msra.mxu0 %v36
    %140 = vmatprep.subr.mxu0 0.0
    %141 = vmatpush1.msra.mxu0 %v35
    %142 = vmatprep.subr.mxu0 0.0
    %143 = vmatpush2.msra.mxu0 0.0
    %144 = vmatprep.subr.mxu0 0.0
    %145 = vmatpush2.msra.mxu0 0.0
    %146 = vmatprep.subr.mxu0 0.0
    %147 = vmatpush2.msra.mxu0 0.0
    %148 = vmatprep.subr.mxu0 0.0
    %149 = vmatpush2.msra.mxu0 0.0
    %150 = vmatprep.subr.mxu0 0.0
    %151 = vmatpush2.msra.mxu0 0.0
    %152 = vmatprep.subr.mxu0 0.0
    %153 = vmatpush2.msra.mxu0 0.0
    %154 = vmatprep.subr.mxu0 0.0
    %155 = vmatpush2.msra.mxu0 0.0
    %156 = vmatprep.subr.mxu0 0.0
    %157 = vmatpush2.msra.mxu0 0.0
    %158 = vmatprep.subr.mxu0 0.0
    %159 = vmatpush2.msra.mxu0 0.0
    %160 = vmatprep.subr.mxu0 0.0
    %161 = vmatpush2.msra.mxu0 0.0
    %162 = vmatprep.subr.mxu0 0.0
    %163 = vmatpush2.msra.mxu0 0.0
    %164 = vmatprep.subr.mxu0 0.0
    %165 = vmatpush2.msra.mxu0 0.0
    %166 = vmatprep.subr.mxu0 0.0
    %167 = vmatpush2.msra.mxu0 0.0
    %168 = vmatprep.subr.mxu0 0.0
    %169 = vmatpush2.msra.mxu0 0.0
    %170 = vmatprep.subr.mxu0 0.0
    %171 = vmatpush2.msra.mxu0 0.0
    %172 = vmatprep.subr.mxu0 0.0
    %173 = vmatpush2.msra.mxu0 0.0
    %174 = vmatprep.mubr.f32.mxu0 0.0
    %175 = vmatmul.mubr.f32.gmra.mxu0 %v87
    %v176 = vpop.f32.mrf.mxu0
    %v177 = vadd.f32 %v48, %v176
    %v178 = vpop.f32.mrf.mxu0
    %179 = vmatprep.mubr.f32.mxu0 0.0
    %180 = vmatmul.mubr.f32.gmra.mxu0 %v90
    %v181 = vpop.f32.mrf.mxu0
    %v182 = vadd.f32 %v53, %v181
    %v183 = vpop.f32.mrf.mxu0
    %184 = vmatprep.mubr.f32.mxu0 0.0
    %185 = vmatmul.mubr.f32.gmra.mxu0 %v93
    %v186 = vpop.f32.mrf.mxu0
    %v187 = vadd.f32 %v58, %v186
    %v188 = vpop.f32.mrf.mxu0
    %189 = vmatprep.mubr.f32.mxu0 0.0
    %190 = vmatmul.mubr.f32.gmra.mxu0 %v96
    %v191 = vpop.f32.mrf.mxu0
    %v192 = vadd.f32 %v63, %v191
    %v193 = vpop.f32.mrf.mxu0
    %194 = vmatprep.mubr.f32.mxu0 0.0
    %195 = vmatmul.mubr.f32.gmra.mxu0 %v99
    %v196 = vpop.f32.mrf.mxu0
    %v197 = vadd.f32 %v68, %v196
    %v198 = vpop.f32.mrf.mxu0
    %199 = vmatprep.mubr.f32.mxu0 0.0
    %200 = vmatmul.mubr.f32.gmra.mxu0 %v102
    %v201 = vpop.f32.mrf.mxu0
    %v202 = vadd.f32 %v73, %v201
    %v203 = vpop.f32.mrf.mxu0
    %204 = vmatprep.mubr.f32.mxu0 0.0
    %205 = vmatmul.mubr.f32.gmra.mxu0 %v105
    %v206 = vpop.f32.mrf.mxu0
    %v207 = vadd.f32 %v78, %v206
    %v208 = vpop.f32.mrf.mxu0
    %209 = vmatprep.mubr.f32.mxu0 0.0
    %210 = vmatmul.mubr.f32.gmra.mxu0 %v108
    %v211 = vpop.f32.mrf.mxu0
    %v212 = vadd.f32 %v83, %v211
    %v213 = vpop.f32.mrf.mxu0
    %214 = vdwg.mxu0
    %v215 = vmax.f32 %v177, 0.0
    %v216 = vmax.f32 %v182, 0.0
    %v217 = vmax.f32 %v187, 0.0
    %v218 = vmax.f32 %v192, 0.0
    %v219 = vmax.f32 %v197, 0.0
    %v220 = vmax.f32 %v202, 0.0
    %v221 = vmax.f32 %v207, 0.0
    %v222 = vmax.f32 %v212, 0.0
    %v223 = vld [vmem:[%s3] sm:$0xff]
    %v224 = vld [vmem:[%s3 + $0x8] sm:$0xff]
    %v225 = vld [vmem:[%s3 + $0x10] sm:$0xff]
    %v226 = vld [vmem:[%s3 + $0x18] sm:$0xff]
    %v227 = vld [vmem:[%s4] sm:$0xff]
    %v228 = vld [vmem:[%s4 + $0x8] sm:$0xff]
    %v229 = vld [vmem:[%s4 + $0x10] sm:$0xff]
    %v230 = vld [vmem:[%s4 + $0x18] sm:$0xff]
    %232 = vset.pattern.permute.xlu0 0
    %233 = vperm.xlu0 %232, %v227
    %v234 = vpop.permute.xlu0 %233
    %237 = vset.pattern.permute.xlu0 0
    %238 = vperm.xlu0 %237, %v228
    %v239 = vpop.permute.xlu0 %238
    %242 = vset.pattern.permute.xlu0 0
    %243 = vperm.xlu0 %242, %v229
    %v244 = vpop.permute.xlu0 %243
    %247 = vset.pattern.permute.xlu0 0
    %248 = vperm.xlu0 %247, %v230
    %v249 = vpop.permute.xlu0 %248
    %vm251 = vcmask 523264
    %v253 = vsel %vm251, %v223, 0
    %v256 = vsel %vm251, %v224, 0
    %v259 = vsel %vm251, %v225, 0
    %v262 = vsel %vm251, %v226, 0
    %264 = vmatprep.subr.mxu0 0.0
    %265 = vmatpush1.msra.mxu0 0.0
    %266 = vmatprep.subr.mxu0 0.0
    %267 = vmatpush1.msra.mxu0 0.0
    %268 = vmatprep.subr.mxu0 0.0
    %269 = vmatpush1.msra.mxu0 0.0
    %270 = vmatprep.subr.mxu0 0.0
    %271 = vmatpush1.msra.mxu0 0.0
    %272 = vmatprep.subr.mxu0 0.0
    %273 = vmatpush1.msra.mxu0 0.0
    %274 = vmatprep.subr.mxu0 0.0
    %275 = vmatpush1.msra.mxu0 0.0
    %276 = vmatprep.subr.mxu0 0.0
    %277 = vmatpush1.msra.mxu0 0.0
    %278 = vmatprep.subr.mxu0 0.0
    %279 = vmatpush1.msra.mxu0 0.0
    %280 = vmatprep.subr.mxu0 0.0
    %281 = vmatpush1.msra.mxu0 %v222
    %282 = vmatprep.subr.mxu0 0.0
    %283 = vmatpush1.msra.mxu0 %v221
    %284 = vmatprep.subr.mxu0 0.0
    %285 = vmatpush1.msra.mxu0 %v220
    %286 = vmatprep.subr.mxu0 0.0
    %287 = vmatpush1.msra.mxu0 %v219
    %288 = vmatprep.subr.mxu0 0.0
    %289 = vmatpush1.msra.mxu0 %v218
    %290 = vmatprep.subr.mxu0 0.0
    %291 = vmatpush1.msra.mxu0 %v217
    %292 = vmatprep.subr.mxu0 0.0
    %293 = vmatpush1.msra.mxu0 %v216
    %294 = vmatprep.subr.mxu0 0.0
    %295 = vmatpush1.msra.mxu0 %v215
    %296 = vmatprep.subr.mxu0 0.0
    %297 = vmatpush2.msra.mxu0 0.0
    %298 = vmatprep.subr.mxu0 0.0
    %299 = vmatpush2.msra.mxu0 0.0
    %300 = vmatprep.subr.mxu0 0.0
    %301 = vmatpush2.msra.mxu0 0.0
    %302 = vmatprep.subr.mxu0 0.0
    %303 = vmatpush2.msra.mxu0 0.0
    %304 = vmatprep.subr.mxu0 0.0
    %305 = vmatpush2.msra.mxu0 0.0
    %306 = vmatprep.subr.mxu0 0.0
    %307 = vmatpush2.msra.mxu0 0.0
    %308 = vmatprep.subr.mxu0 0.0
    %309 = vmatpush2.msra.mxu0 0.0
    %310 = vmatprep.subr.mxu0 0.0
    %311 = vmatpush2.msra.mxu0 0.0
    %312 = vmatprep.subr.mxu0 0.0
    %313 = vmatpush2.msra.mxu0 0.0
    %314 = vmatprep.subr.mxu0 0.0
    %315 = vmatpush2.msra.mxu0 0.0
    %316 = vmatprep.subr.mxu0 0.0
    %317 = vmatpush2.msra.mxu0 0.0
    %318 = vmatprep.subr.mxu0 0.0
    %319 = vmatpush2.msra.mxu0 0.0
    %320 = vmatprep.subr.mxu0 0.0
    %321 = vmatpush2.msra.mxu0 0.0
    %322 = vmatprep.subr.mxu0 0.0
    %323 = vmatpush2.msra.mxu0 0.0
    %324 = vmatprep.subr.mxu0 0.0
    %325 = vmatpush2.msra.mxu0 0.0
    %326 = vmatprep.subr.mxu0 0.0
    %327 = vmatpush2.msra.mxu0 0.0
    %328 = vmatprep.mubr.f32.mxu0 0.0
    %329 = vmatmul.mubr.f32.gmra.mxu0 %v253
    %v330 = vpop.f32.mrf.mxu0
    %v331 = vadd.f32 %v234, %v330
    %v332 = vpop.f32.mrf.mxu0
    %333 = vmatprep.mubr.f32.mxu0 0.0
    %334 = vmatmul.mubr.f32.gmra.mxu0 %v256
    %v335 = vpop.f32.mrf.mxu0
    %v336 = vadd.f32 %v239, %v335
    %v337 = vpop.f32.mrf.mxu0
    %338 = vmatprep.mubr.f32.mxu0 0.0
    %339 = vmatmul.mubr.f32.gmra.mxu0 %v259
    %v340 = vpop.f32.mrf.mxu0
    %v341 = vadd.f32 %v244, %v340
    %v342 = vpop.f32.mrf.mxu0
    %343 = vmatprep.mubr.f32.mxu0 0.0
    %344 = vmatmul.mubr.f32.gmra.mxu0 %v262
    %v345 = vpop.f32.mrf.mxu0
    %v346 = vadd.f32 %v249, %v345
    %v347 = vpop.f32.mrf.mxu0
    %348 = vdwg.mxu0
    %v349 = vmax.f32 %v331, 0.0
    %v350 = vmax.f32 %v336, 0.0
    %v351 = vmax.f32 %v341, 0.0
    %v352 = vmax.f32 %v346, 0.0
    %v353 = vld [vmem:[%s5] sm:$0xff]
    %v354 = vld [vmem:[%s5 + $0x8] sm:$0xff]
    %v355 = vld [vmem:[%s6] sm:$0xff]
    %v356 = vld [vmem:[%s6 + $0x8] sm:$0xff]
    %358 = vset.pattern.permute.xlu0 0
    %359 = vperm.xlu0 %358, %v355
    %v360 = vpop.permute.xlu0 %359
    %363 = vset.pattern.permute.xlu0 0
    %364 = vperm.xlu0 %363, %v356
    %v365 = vpop.permute.xlu0 %364
    %vm367 = vcmask 261120
    %v369 = vsel %vm367, %v353, 0
    %v372 = vsel %vm367, %v354, 0
    %374 = vmatprep.subr.mxu0 0.0
    %375 = vmatpush1.msra.mxu0 0.0
    %376 = vmatprep.subr.mxu0 0.0
    %377 = vmatpush1.msra.mxu0 0.0
    %378 = vmatprep.subr.mxu0 0.0
    %379 = vmatpush1.msra.mxu0 0.0
    %380 = vmatprep.subr.mxu0 0.0
    %381 = vmatpush1.msra.mxu0 0.0
    %382 = vmatprep.subr.mxu0 0.0
    %383 = vmatpush1.msra.mxu0 0.0
    %384 = vmatprep.subr.mxu0 0.0
    %385 = vmatpush1.msra.mxu0 0.0
    %386 = vmatprep.subr.mxu0 0.0
    %387 = vmatpush1.msra.mxu0 0.0
    %388 = vmatprep.subr.mxu0 0.0
    %389 = vmatpush1.msra.mxu0 0.0
    %390 = vmatprep.subr.mxu0 0.0
    %391 = vmatpush1.msra.mxu0 0.0
    %392 = vmatprep.subr.mxu0 0.0
    %393 = vmatpush1.msra.mxu0 0.0
    %394 = vmatprep.subr.mxu0 0.0
    %395 = vmatpush1.msra.mxu0 0.0
    %396 = vmatprep.subr.mxu0 0.0
    %397 = vmatpush1.msra.mxu0 0.0
    %398 = vmatprep.subr.mxu0 0.0
    %399 = vmatpush1.msra.mxu0 %v352
    %400 = vmatprep.subr.mxu0 0.0
    %401 = vmatpush1.msra.mxu0 %v351
    %402 = vmatprep.subr.mxu0 0.0
    %403 = vmatpush1.msra.mxu0 %v350
    %404 = vmatprep.subr.mxu0 0.0
    %405 = vmatpush1.msra.mxu0 %v349
    %406 = vmatprep.subr.mxu0 0.0
    %407 = vmatpush2.msra.mxu0 0.0
    %408 = vmatprep.subr.mxu0 0.0
    %409 = vmatpush2.msra.mxu0 0.0
    %410 = vmatprep.subr.mxu0 0.0
    %411 = vmatpush2.msra.mxu0 0.0
    %412 = vmatprep.subr.mxu0 0.0
    %413 = vmatpush2.msra.mxu0 0.0
    %414 = vmatprep.subr.mxu0 0.0
    %415 = vmatpush2.msra.mxu0 0.0
    %416 = vmatprep.subr.mxu0 0.0
    %417 = vmatpush2.msra.mxu0 0.0
    %418 = vmatprep.subr.mxu0 0.0
    %419 = vmatpush2.msra.mxu0 0.0
    %420 = vmatprep.subr.mxu0 0.0
    %421 = vmatpush2.msra.mxu0 0.0
    %422 = vmatprep.subr.mxu0 0.0
    %423 = vmatpush2.msra.mxu0 0.0
    %424 = vmatprep.subr.mxu0 0.0
    %425 = vmatpush2.msra.mxu0 0.0
    %426 = vmatprep.subr.mxu0 0.0
    %427 = vmatpush2.msra.mxu0 0.0
    %428 = vmatprep.subr.mxu0 0.0
    %429 = vmatpush2.msra.mxu0 0.0
    %430 = vmatprep.subr.mxu0 0.0
    %431 = vmatpush2.msra.mxu0 0.0
    %432 = vmatprep.subr.mxu0 0.0
    %433 = vmatpush2.msra.mxu0 0.0
    %434 = vmatprep.subr.mxu0 0.0
    %435 = vmatpush2.msra.mxu0 0.0
    %436 = vmatprep.subr.mxu0 0.0
    %437 = vmatpush2.msra.mxu0 0.0
    %438 = vmatprep.mubr.f32.mxu0 0.0
    %439 = vmatmul.mubr.f32.gmra.mxu0 %v369
    %v440 = vpop.f32.mrf.mxu0
    %v441 = vadd.f32 %v360, %v440
    %v442 = vpop.f32.mrf.mxu0
    %443 = vmatprep.mubr.f32.mxu0 0.0
    %444 = vmatmul.mubr.f32.gmra.mxu0 %v372
    %v445 = vpop.f32.mrf.mxu0
    %v446 = vadd.f32 %v365, %v445
    %v447 = vpop.f32.mrf.mxu0
    %448 = vdwg.mxu0
    %449 = vst [vmem:[#allocation2] sm:$0xff] %v441
    %450 = vst [vmem:[#allocation2 + $0x8] sm:$0xff] %v446
    // Predicated region
    $region30: #{tpu_custom_call.1} parent=1 // pred_check
      _
    $region31: #{tpu_custom_call.1} parent=1 // pred_check_branch
      %452 = sbr.rel (0) target = $region33
    $region32: #{tpu_custom_call.1} parent=1 // pred_region
      %s454 = ssub.s32 256, 256
      %455 = vsyncadd [#allocation3], %s454
      %s456 = sshll.u32 [#allocation2], 4
      %s457 = int_to_ptr.vmem [resolvable:$true] %s456
      %462 = dma.vmem_to_hbm [thread:$0]  %s457, 256, %s7, [#allocation3], 128, 128, 8
    $region33: #{tpu_custom_call.1} parent=1 // pred_fallthru
      _
    // Predicated region
    $region34: #{tpu_custom_call.1} parent=1 // pred_check
      _
    $region35: #{tpu_custom_call.1} parent=1 // pred_check_branch
      %464 = sbr.rel (0) target = $region37
    $region36: #{tpu_custom_call.1} parent=1 // pred_region
      %465 = dma.done [#allocation3], 256
    $region37: #{tpu_custom_call.1} parent=1 // pred_fallthru
      _
    %466 = vsyncpa [#allocation3], 1

</llo_original>
